<compile_context>
chip_gen: v7x
topology: tpu7x:2x2x1
jax: 0.10.0
libtpu: 0.0.40
codegen_flags: <defaults>
</compile_context>

<pallas_src>
import functools

import jax
import jax.numpy as jnp
from jax.experimental import pallas as pl
from jax.experimental.pallas import tpu as pltpu


def _round_up(x, m):
    return ((x + m - 1) // m) * m


def _round_down(x, m):
    return (x // m) * m


def _vmem_budget():
    """Generation-aware (limit, per-buffer tile target) in bytes.

    v5e/v6e (128 MiB physical VMEM) -> limit 96 MiB, tile target 16 MiB
    v7x     ( 64 MiB per TC)        -> limit 48 MiB, tile target  8 MiB
    """
    try:
        cap = int(pltpu.get_tpu_info().vmem_capacity_bytes)
    except Exception:
        cap = 64 * 1024 * 1024  # conservative (v7x-sized) fallback
    limit = min((cap * 3) // 4, 96 * 1024 * 1024)
    target = limit // 6  # 2x double-buffered input + output + f32 headroom
    return limit, target


# -----------------------------------------------------------------------------
# Kernel 1: mean over the patch axis (dim=2) of vision_feats [B, T, N, D],
#           computed on a flattened [BT, N, D] view.
# -----------------------------------------------------------------------------
def _mean_patch_kernel(v_ref, o_ref, *, inv_n):
    # v_ref: (bt_tile, N, D); o_ref: (bt_tile, D).
    # f32 accumulation is fused into the reduction (no full-tile f32 upcast).
    s = jnp.sum(v_ref[...], axis=1, dtype=jnp.float32)
    o_ref[...] = (s * jnp.float32(inv_n)).astype(o_ref.dtype)


def _mean_patch_acc_kernel(v_ref, o_ref, acc_ref, *, inv_n):
    # Grid: (BT blocks, N blocks). N is the last ('arbitrary') reduction axis.
    k = pl.program_id(1)

    @pl.when(k == 0)
    def _():
        acc_ref[...] = jnp.zeros_like(acc_ref)

    acc_ref[...] += jnp.sum(v_ref[...], axis=1, dtype=jnp.float32)

    @pl.when(k == pl.num_programs(1) - 1)
    def _():
        o_ref[...] = (acc_ref[...] * jnp.float32(inv_n)).astype(o_ref.dtype)


def mean_over_patches(vision_feats: jax.Array, *, tile_target_bytes=None) -> jax.Array:
    """Pallas kernel computing vision_feats.mean(dim=2). [B,T,N,D] -> [B,T,D]."""
    B, T, N, D = vision_feats.shape
    BT = B * T
    x = vision_feats.reshape(BT, N, D)  # free flatten
    dtype = vision_feats.dtype

    limit, target = _vmem_budget()
    if tile_target_bytes is not None:
        target = int(tile_target_bytes)

    # Effective bytes/element: input element + f32 reduction headroom.
    eff = jnp.dtype(dtype).itemsize + 4
    row_bytes = N * D * eff

    def single_pass(bt_tile):
        return pl.pallas_call(
            functools.partial(_mean_patch_kernel, inv_n=1.0 / N),
            out_shape=jax.ShapeDtypeStruct((BT, D), dtype),
            grid_spec=pltpu.PrefetchScalarGridSpec(
                num_scalar_prefetch=0,
                grid=(pl.cdiv(BT, bt_tile),),
                in_specs=[pl.BlockSpec((bt_tile, N, D), lambda i: (i, 0, 0))],
                out_specs=pl.BlockSpec((bt_tile, D), lambda i: (i, 0)),
            ),
            compiler_params=pltpu.CompilerParams(
                dimension_semantics=("parallel",),
                vmem_limit_bytes=limit,
            ),
        )(x)

    def n_tiled(bt_tile, n_tile):
        return pl.pallas_call(
            functools.partial(_mean_patch_acc_kernel, inv_n=1.0 / N),
            out_shape=jax.ShapeDtypeStruct((BT, D), dtype),
            grid_spec=pltpu.PrefetchScalarGridSpec(
                num_scalar_prefetch=0,
                grid=(pl.cdiv(BT, bt_tile), N // n_tile),
                in_specs=[pl.BlockSpec((bt_tile, n_tile, D), lambda i, k: (i, k, 0))],
                out_specs=pl.BlockSpec((bt_tile, D), lambda i, k: (i, 0)),
                scratch_shapes=[pltpu.VMEM((bt_tile, D), jnp.float32)],
            ),
            compiler_params=pltpu.CompilerParams(
                dimension_semantics=("parallel", "arbitrary"),
                vmem_limit_bytes=limit,
            ),
        )(x)

    bt_base = BT if BT < 8 else 8  # smallest legal BT block (mult-of-8 or full dim)

    if bt_base * row_bytes <= target:
        # A full (N, D) slab per BT row fits the per-buffer target: single pass,
        # bt_tile sized to the target, ragged last block handled by cdiv grid.
        if BT * row_bytes <= target:
            bt_tile = BT
        else:
            bt_tile = max(8, min(_round_down(target // row_bytes, 8),
                                 _round_down(BT, 8)))
        out = single_pass(bt_tile)
    else:
        # Need an N reduction axis: pick a multiple-of-8 divisor of N whose slab
        # fits the target (divisor -> no pad contamination of the accumulator).
        n_divs = [d for d in range(8, N, 8)
                  if N % d == 0 and bt_base * d * D * eff <= target]
        if n_divs:
            n_tile = max(n_divs)
            if BT <= 8:
                bt_tile = BT
            else:
                bt_tile = max(8, _round_down(min(target // (n_tile * D * eff), BT), 8))
            out = n_tiled(bt_tile, n_tile)
        else:
            # TODO(synk): masked ragged-N accumulation for N with no multiple-of-8
            # divisor; fall back to the (correct) single-pass kernel.
            out = single_pass(bt_base)

    return out.reshape(B, T, D)


# -----------------------------------------------------------------------------
# Kernel 2: token embedding lookup (nn.Embedding equivalent) as a batched DMA
#           row gather. Token ids are scalar-prefetched into SMEM; the table
#           stays in HBM (memory_space=pl.ANY). Each grid step gathers TOK_TILE
#           rows with many in-flight DMAs straight into a dense (TOK_TILE, H)
#           output block, amortizing per-step overhead and hiding DMA latency.
# -----------------------------------------------------------------------------
def _embed_gather_kernel(tok_ref, table_hbm, o_ref, sem, *, tok_tile):
    base = pl.program_id(0) * tok_tile

    @pl.loop(0, tok_tile)
    def _start(j):
        tok = tok_ref[base + j]
        pltpu.make_async_copy(
            table_hbm.at[pl.ds(tok, 1), :], o_ref.at[pl.ds(j, 1), :], sem.at[j]
        ).start()

    @pl.loop(0, tok_tile)
    def _wait(j):
        tok = tok_ref[base + j]
        pltpu.make_async_copy(
            table_hbm.at[pl.ds(tok, 1), :], o_ref.at[pl.ds(j, 1), :], sem.at[j]
        ).wait()


_XLA_GATHER_MAX_TOKENS = 64  # below this, pallas_call launch overhead dominates


def embed_tokens_pallas(text_tokens: jax.Array, embed_table: jax.Array) -> jax.Array:
    """Pallas equivalent of nn.Embedding(text_tokens). [B,S] -> [B,S,H]."""
    B, S = text_tokens.shape
    V, H = embed_table.shape
    n_tok = B * S
    # Clamp ids so an out-of-range token can never drive an OOB DMA.
    tok = jnp.clip(text_tokens.reshape(n_tok).astype(jnp.int32), 0, V - 1)

    if n_tok <= _XLA_GATHER_MAX_TOKENS:
        # Tiny decode-style batches: XLA's gather is already latency-optimal.
        return jnp.take(embed_table, tok, axis=0).reshape(B, S, H)

    limit, _ = _vmem_budget()
    tok_tile = min(128, _round_up(n_tok, 8))
    n_pad = _round_up(n_tok, tok_tile)
    tok = jnp.pad(tok, (0, n_pad - n_tok))  # pad with id 0 (valid row)

    out = pl.pallas_call(
        functools.partial(_embed_gather_kernel, tok_tile=tok_tile),
        out_shape=jax.ShapeDtypeStruct((n_pad, H), embed_table.dtype),
        grid_spec=pltpu.PrefetchScalarGridSpec(
            num_scalar_prefetch=1,
            grid=(n_pad // tok_tile,),
            in_specs=[pl.BlockSpec(memory_space=pl.ANY)],  # table stays in HBM
            out_specs=pl.BlockSpec((tok_tile, H), lambda i, tok_sm: (i, 0)),
            scratch_shapes=[pltpu.SemaphoreType.DMA((tok_tile,))],
        ),
        compiler_params=pltpu.CompilerParams(
            dimension_semantics=("parallel",),  # token chunks independent (v7x 2 TCs)
            vmem_limit_bytes=limit,
        ),
    )(tok, embed_table)
    return out[:n_tok].reshape(B, S, H)


# -----------------------------------------------------------------------------
# Adapter (glue identical to the PyTorch module's forward semantics)
# -----------------------------------------------------------------------------
class XAttnAdapterPallas:
    def __init__(self, embed_table: jax.Array, injection_layer_ids):
        self.injection_layer_ids = list(map(str, injection_layer_ids))
        self.embed_table = embed_table

    def _embed_text_tokens(self, text_tokens):
        return {'0': embed_tokens_pallas(text_tokens, self.embed_table)}

    def _init_multilayer_vision_feats_dict(self, vision_feats):
        multilayer_vision_feats = {}
        for layer_id in self.injection_layer_ids:
            if layer_id == '0':
                multilayer_vision_feats[layer_id] = mean_over_patches(vision_feats)
            else:
                multilayer_vision_feats[layer_id] = vision_feats
        return multilayer_vision_feats

    def _combine_multilayer_embedding_dicts(self, multilayer_video_feats,
                                            text_tokens, multilayer_embedded_text_tokens):
        final_multilayer_embeddings = {
            'text_tokens': text_tokens,
            '0': {'comb': multilayer_embedded_text_tokens['0']},
        }
        # NOTE: if '0' is an injection layer id, its entry is overwritten below,
        # exactly matching the PyTorch reference behavior.
        for layer_id in self.injection_layer_ids:
            final_multilayer_embeddings[layer_id] = {'vision': multilayer_video_feats[layer_id]}
        return final_multilayer_embeddings

    def forward(self, vision_feats, text_tokens,
                vision_xattn_mask=None, buffer_xattn_mask=None):
        vision_feats = vision_feats['feats'] if isinstance(vision_feats, dict) else vision_feats
        embedded_vision_feats = self._init_multilayer_vision_feats_dict(vision_feats)
        embedded_text_tokens = self._embed_text_tokens(text_tokens)
        final_embedding = self._combine_multilayer_embedding_dicts(
            embedded_vision_feats, text_tokens, embedded_text_tokens)
        final_embedding['type'] = 'xattn'
        final_embedding['vision_xattn_mask'] = vision_xattn_mask
        final_embedding['buffer_xattn_mask'] = buffer_xattn_mask
        return final_embedding


# -----------------------------------------------------------------------------
# Demo / self-check
# -----------------------------------------------------------------------------
if __name__ == "__main__":
    key = jax.random.PRNGKey(0)
    k_vis, k_tab, k_tok = jax.random.split(key, 3)

    # Small shapes consistent with the forward pass (lane-dense D and H,
    # deliberately non-multiple-of-8 BT to exercise ragged tiling).
    B, T, N, D = 2, 5, 16, 128     # vision_feats [B, T, N, D] -> BT = 10
    S = 48                          # text sequence length (B*S = 96 tokens)
    V, H = 64, 128                  # vocab size, language hidden dim

    vision_feats = jax.random.normal(k_vis, (B, T, N, D), dtype=jnp.float32)
    embed_table = jax.random.normal(k_tab, (V, H), dtype=jnp.float32) * 0.02
    text_tokens = jax.random.randint(k_tok, (B, S), 0, V, dtype=jnp.int32)
    vision_xattn_mask = jnp.ones((B, T * N), dtype=jnp.bool_)
    buffer_xattn_mask = jnp.ones((B, S), dtype=jnp.bool_)

    ref_mean = jnp.mean(vision_feats.astype(jnp.float32), axis=2).astype(vision_feats.dtype)
    ref_embed = embed_table[text_tokens]

    # ---- Case 1: '0' IS an injection layer id -> its entry holds the mean
    #      (the embedding entry is overwritten, exactly as in the PyTorch ref).
    adapter = XAttnAdapterPallas(embed_table, injection_layer_ids=[0, 8])
    out = adapter.forward({'feats': vision_feats}, text_tokens,
                          vision_xattn_mask=vision_xattn_mask,
                          buffer_xattn_mask=buffer_xattn_mask)
    jax.block_until_ready(out['0']['vision'])
    jax.block_until_ready(out['8']['vision'])
    assert out['0']['vision'].shape == (B, T, D)
    assert jnp.allclose(out['0']['vision'], ref_mean, atol=1e-5, rtol=1e-5)
    assert 'comb' not in out['0']          # overwritten, matching PyTorch semantics
    assert out['8']['vision'] is vision_feats
    assert out['type'] == 'xattn'
    assert out['text_tokens'] is text_tokens
    assert out['vision_xattn_mask'] is vision_xattn_mask
    assert out['buffer_xattn_mask'] is buffer_xattn_mask

    # ---- Case 2: '0' NOT an injection layer id -> '0' keeps the embedded text.
    adapter2 = XAttnAdapterPallas(embed_table, injection_layer_ids=[8])
    out2 = adapter2.forward(vision_feats, text_tokens)
    jax.block_until_ready(out2['0']['comb'])
    assert out2['0']['comb'].shape == (B, S, H)
    assert jnp.allclose(out2['0']['comb'], ref_embed, atol=1e-6, rtol=1e-6)
    assert out2['8']['vision'] is vision_feats
    assert out2['vision_xattn_mask'] is None

    # ---- Forced N-tiled (accumulator) path of the mean kernel, small VMEM target.
    got_mean_tiled = mean_over_patches(vision_feats, tile_target_bytes=64 * 1024)
    jax.block_until_ready(got_mean_tiled)
    assert jnp.allclose(got_mean_tiled, ref_mean, atol=1e-5, rtol=1e-5)

    print("KERNEL_OK")
</pallas_src>

<mosaic_0001>
module attributes {stable_mosaic.version = 11 : i64} {
  func.func @_mean_patch_kernel(%arg0: i32, %arg1: memref<10x16x128xf32, #tpu.memory_space<vmem>>, %arg2: memref<10x128xf32, #tpu.memory_space<vmem>>) attributes {dimension_semantics = [#tpu.dimension_semantics<parallel>], iteration_bounds = array<i64: 1>, scalar_prefetch = 0 : i64, scratch_operands = 0 : i64, tpu.core_type = #tpu.core_type<tc>, window_params = [{transform_indices = @transform_0, window_bounds = array<i64: 10, 16, 128>}, {transform_indices = @transform_1, window_bounds = array<i64: 10, 128>}]} {
    %c0 = arith.constant 0 : index
    %c0_0 = arith.constant 0 : index
    %c0_1 = arith.constant 0 : index
    %0 = vector.load %arg1[%c0, %c0_0, %c0_1] : memref<10x16x128xf32, #tpu.memory_space<vmem>>, vector<10x16x128xf32>
    %cst = arith.constant dense<0.000000e+00> : vector<10x128xf32>
    %1 = vector.multi_reduction <add>, %0, %cst [1] : vector<10x16x128xf32> to vector<10x128xf32>
    %cst_2 = arith.constant 6.250000e-02 : f32
    %2 = vector.broadcast %cst_2 : f32 to vector<10x128xf32>
    %3 = arith.mulf %1, %2 : vector<10x128xf32>
    %c0_3 = arith.constant 0 : index
    %c0_4 = arith.constant 0 : index
    %4 = vector.load %arg2[%c0_3, %c0_4] : memref<10x128xf32, #tpu.memory_space<vmem>>, vector<10x128xf32>
    tpu.vector_store %arg2[%c0_3, %c0_4], %3 {strides = array<i32>} : memref<10x128xf32, #tpu.memory_space<vmem>>, vector<10x128xf32>,
    return
  }
  func.func @transform_0(%arg0: i32) -> (i32, i32, i32) {
    %c0_i32 = arith.constant 0 : i32
    %c0_i32_0 = arith.constant 0 : i32
    %c0_i32_1 = arith.constant 0 : i32
    return %arg0, %c0_i32, %c0_i32_0 : i32, i32, i32
  }
  func.func @transform_1(%arg0: i32) -> (i32, i32) {
    %c0_i32 = arith.constant 0 : i32
    %c0_i32_0 = arith.constant 0 : i32
    return %arg0, %c0_i32 : i32, i32
  }
}

</mosaic_0001>

<llo_original>
// kernel: tpu_custom_call.1
$region0: #{tpu_custom_call.1}
  #allocation0 [shape = 'u32[]', space=smem, size = 0x4, offset = 0x4, fixed_abs, tag = 'smem constant byte address 0x4 - core index']
  #allocation1 [shape = 'u32[144,128]{1,0:T(1,128)}', space=vmem, size = 0x12000, scoped, tag = 'internal scratch']
  %s0 = inlined_call_operand.hbm [shape: f32[10,16,128], index: 0, kind: input, shape index: {}]
  %s1 = inlined_call_operand.hbm [shape: f32[10,128], index: 1, kind: output, shape index: {}]
  %s2 = sld [smem:[#allocation0]]
  $region18: #{tpu_custom_call.1} parent=0
    _
  %s4 = ssub.s32 1, %s2
  %s5 = scalar_select 0, %s4, %s2
  $region1: #{tpu_custom_call.1} parent=0
    #allocation2 [shape = 'u8[81920]{0}', space=vmem, size = 0x14000, scoped, tag = 'input window, operand 0, single buffered']
    #allocation3 [shape = 's32[1]{0}', space=sflag, size = 0x4, scoped, tag = 'scoped memory for tpu_custom_call.1']
    #allocation4 [shape = 's32[1]{0}', space=sflag, size = 0x4, scoped, tag = 'scoped memory for tpu_custom_call.1']
    #allocation5 [shape = 'u8[8192]{0}', space=vmem, size = 0x2000, scoped, tag = 'output window, operand 0, single buffered']
    %6 = vsyncpa [#allocation3], 0
    %7 = vsyncpa [#allocation4], 0
    // Predicated region
    $region2: #{tpu_custom_call.1} parent=1 // pred_check
      _
    $region3: #{tpu_custom_call.1} parent=1 // pred_check_branch
      %9 = sbr.rel (0) target = $region5
    $region4: #{tpu_custom_call.1} parent=1 // pred_region
      %s11 = ssub.s32 2560, 2560
      %12 = vsyncadd [#allocation3], %s11
      %s13 = sshll.u32 [#allocation2], 4
      %s14 = int_to_ptr.vmem [resolvable:$true] %s13
      %19 = dma.hbm_to_vmem [thread:$0]  %s0, 2560, %s14, [#allocation3], 128, 128, 8
    $region5: #{tpu_custom_call.1} parent=1 // pred_fallthru
      _
    // Predicated region
    $region6: #{tpu_custom_call.1} parent=1 // pred_check
      _
    $region7: #{tpu_custom_call.1} parent=1 // pred_check_branch
      %21 = sbr.rel (0) target = $region9
    $region8: #{tpu_custom_call.1} parent=1 // pred_region
      %22 = dma.done [#allocation3], 2560
    $region9: #{tpu_custom_call.1} parent=1 // pred_fallthru
      _
    %v23 = vld [vmem:[#allocation2] sm:$0xff]
    %v24 = vld [vmem:[#allocation2 + $0x8] sm:$0xff]
    %v25 = vld [vmem:[#allocation2 + $0x10] sm:$0xff]
    %v26 = vld [vmem:[#allocation2 + $0x18] sm:$0xff]
    %v27 = vld [vmem:[#allocation2 + $0x20] sm:$0xff]
    %v28 = vld [vmem:[#allocation2 + $0x28] sm:$0xff]
    %v29 = vld [vmem:[#allocation2 + $0x30] sm:$0xff]
    %v30 = vld [vmem:[#allocation2 + $0x38] sm:$0xff]
    %v31 = vld [vmem:[#allocation2 + $0x40] sm:$0xff]
    %v32 = vld [vmem:[#allocation2 + $0x48] sm:$0xff]
    %v33 = vld [vmem:[#allocation2 + $0x50] sm:$0xff]
    %v34 = vld [vmem:[#allocation2 + $0x58] sm:$0xff]
    %v35 = vld [vmem:[#allocation2 + $0x60] sm:$0xff]
    %v36 = vld [vmem:[#allocation2 + $0x68] sm:$0xff]
    %v37 = vld [vmem:[#allocation2 + $0x70] sm:$0xff]
    %v38 = vld [vmem:[#allocation2 + $0x78] sm:$0xff]
    %v39 = vld [vmem:[#allocation2 + $0x80] sm:$0xff]
    %v40 = vld [vmem:[#allocation2 + $0x88] sm:$0xff]
    %v41 = vld [vmem:[#allocation2 + $0x90] sm:$0xff]
    %v42 = vld [vmem:[#allocation2 + $0x98] sm:$0xff]
    %v43 = vadd.f32 %v23, %v24
    %v44 = vrot.slane %v43, 4
    %v45 = vadd.f32 %v43, %v44
    %v46 = vrot.slane %v45, 2
    %v47 = vadd.f32 %v45, %v46
    %v48 = vrot.slane %v47, 1
    %v49 = vadd.f32 %v47, %v48
    %v50 = vadd.f32 %v25, %v26
    %v51 = vrot.slane %v50, 4
    %v52 = vadd.f32 %v50, %v51
    %v53 = vrot.slane %v52, 2
    %v54 = vadd.f32 %v52, %v53
    %v55 = vrot.slane %v54, 1
    %v56 = vadd.f32 %v54, %v55
    %v57 = vadd.f32 %v27, %v28
    %v58 = vrot.slane %v57, 4
    %v59 = vadd.f32 %v57, %v58
    %v60 = vrot.slane %v59, 2
    %v61 = vadd.f32 %v59, %v60
    %v62 = vrot.slane %v61, 1
    %v63 = vadd.f32 %v61, %v62
    %v64 = vadd.f32 %v29, %v30
    %v65 = vrot.slane %v64, 4
    %v66 = vadd.f32 %v64, %v65
    %v67 = vrot.slane %v66, 2
    %v68 = vadd.f32 %v66, %v67
    %v69 = vrot.slane %v68, 1
    %v70 = vadd.f32 %v68, %v69
    %v71 = vadd.f32 %v31, %v32
    %v72 = vrot.slane %v71, 4
    %v73 = vadd.f32 %v71, %v72
    %v74 = vrot.slane %v73, 2
    %v75 = vadd.f32 %v73, %v74
    %v76 = vrot.slane %v75, 1
    %v77 = vadd.f32 %v75, %v76
    %v78 = vadd.f32 %v33, %v34
    %v79 = vrot.slane %v78, 4
    %v80 = vadd.f32 %v78, %v79
    %v81 = vrot.slane %v80, 2
    %v82 = vadd.f32 %v80, %v81
    %v83 = vrot.slane %v82, 1
    %v84 = vadd.f32 %v82, %v83
    %v85 = vadd.f32 %v35, %v36
    %v86 = vrot.slane %v85, 4
    %v87 = vadd.f32 %v85, %v86
    %v88 = vrot.slane %v87, 2
    %v89 = vadd.f32 %v87, %v88
    %v90 = vrot.slane %v89, 1
    %v91 = vadd.f32 %v89, %v90
    %v92 = vadd.f32 %v37, %v38
    %v93 = vrot.slane %v92, 4
    %v94 = vadd.f32 %v92, %v93
    %v95 = vrot.slane %v94, 2
    %v96 = vadd.f32 %v94, %v95
    %v97 = vrot.slane %v96, 1
    %v98 = vadd.f32 %v96, %v97
    %v99 = vadd.f32 %v39, %v40
    %v100 = vrot.slane %v99, 4
    %v101 = vadd.f32 %v99, %v100
    %v102 = vrot.slane %v101, 2
    %v103 = vadd.f32 %v101, %v102
    %v104 = vrot.slane %v103, 1
    %v105 = vadd.f32 %v103, %v104
    %v106 = vadd.f32 %v41, %v42
    %v107 = vrot.slane %v106, 4
    %v108 = vadd.f32 %v106, %v107
    %v109 = vrot.slane %v108, 2
    %v110 = vadd.f32 %v108, %v109
    %v111 = vrot.slane %v110, 1
    %v112 = vadd.f32 %v110, %v111
    %v113 = vmul.f32 %v49, 0.0625
    %v114 = vmul.f32 %v56, 0.0625
    %v115 = vmul.f32 %v63, 0.0625
    %v116 = vmul.f32 %v70, 0.0625
    %v117 = vmul.f32 %v77, 0.0625
    %v118 = vmul.f32 %v84, 0.0625
    %v119 = vmul.f32 %v91, 0.0625
    %v120 = vmul.f32 %v98, 0.0625
    %v121 = vmul.f32 %v105, 0.0625
    %v122 = vmul.f32 %v112, 0.0625
    %vm133 = vcmask 1041409
    %v134 = vsel %vm133, %v114, %v113
    %vm135 = vcmask 1042434
    %v136 = vsel %vm135, %v115, %v134
    %vm137 = vcmask 1043459
    %v138 = vsel %vm137, %v116, %v136
    %vm139 = vcmask 1044484
    %v140 = vsel %vm139, %v117, %v138
    %vm141 = vcmask 1045509
    %v142 = vsel %vm141, %v118, %v140
    %vm143 = vcmask 1046534
    %v144 = vsel %vm143, %v119, %v142
    %vm145 = vcmask 1047559
    %v146 = vsel %vm145, %v120, %v144
    %v147 = vsel %vm133, %v122, %v121
    %150 = vst [vmem:[#allocation5] sm:$0xff] %v146
    %151 = vst [vmem:[#allocation5 + $0x8] sm:$0x3] %v147
    // Predicated region
    $region10: #{tpu_custom_call.1} parent=1 // pred_check
      _
    $region11: #{tpu_custom_call.1} parent=1 // pred_check_branch
      %153 = sbr.rel (0) target = $region13
    $region12: #{tpu_custom_call.1} parent=1 // pred_region
      %s155 = ssub.s32 256, 256
      %156 = vsyncadd [#allocation4], %s155
      %s157 = sshll.u32 [#allocation5], 4
      %s158 = int_to_ptr.vmem [resolvable:$true] %s157
      %163 = dma.vmem_to_hbm [thread:$0]  %s158, 256, %s1, [#allocation4], 128, 128, 8
    $region13: #{tpu_custom_call.1} parent=1 // pred_fallthru
      _
    // Predicated region
    $region14: #{tpu_custom_call.1} parent=1 // pred_check
      _
    $region15: #{tpu_custom_call.1} parent=1 // pred_check_branch
      %165 = sbr.rel (0) target = $region17
    $region16: #{tpu_custom_call.1} parent=1 // pred_region
      %166 = dma.done [#allocation4], 256
    $region17: #{tpu_custom_call.1} parent=1 // pred_fallthru
      _
    %167 = vsyncpa [#allocation3], 1
    %168 = vsyncpa [#allocation4], 1

</llo_original>
